<compile_context>
chip_gen: v5e
topology: v5e:2x2
jax: 0.10.0
libtpu: 0.0.40
codegen_flags: <defaults>
</compile_context>

<pallas_src>
import jax
import jax.numpy as jnp
from jax.experimental import pallas as pl
from jax.experimental.pallas import tpu as pltpu

BN_EPS = 1e-5
NEG_SLOPE = 0.1
TM_MAX = 4096                              # max batch-tile rows
STREAM_VMEM_BUDGET = 16 * 1024 * 1024      # budget for double-buffered row streams
VMEM_LIMIT_BYTES = 48 * 1024 * 1024        # < v7x 64 MiB physical, > all default scoped limits


def _round_up(n, m):
    return ((n + m - 1) // m) * m


def _leaky_relu(y):
    return jnp.where(y > 0, y, NEG_SLOPE * y)


def mlp_kernel(x_ref, side_ref,
               w0x_ref, w0s_ref, c0_ref,
               w1_ref, c1_ref,
               wf_ref, bf_ref,
               out_ref):
    """One batch tile: two fused (linear + folded-BN + LeakyReLU) blocks + final dense."""
    # ---- block 0: (x | side) @ W0' + c0  (BatchNorm pre-folded into W0'/c0) ----
    y = jnp.dot(x_ref[...], w0x_ref[...], preferred_element_type=jnp.float32)
    y = y + jnp.dot(side_ref[...], w0s_ref[...], preferred_element_type=jnp.float32)
    y = _leaky_relu(y + c0_ref[...])

    # ---- block 1 ----
    y = jnp.dot(y, w1_ref[...], preferred_element_type=jnp.float32)
    y = _leaky_relu(y + c1_ref[...])

    # ---- final dense (out_features = 1): (1,h1) x (tm,h1)^T MXU dot ----
    # produces a lane-dense (1, tm) row (batch along lanes) for the store.
    row = jax.lax.dot_general(
        wf_ref[...], y,
        dimension_numbers=(((1,), (1,)), ((), ())),
        preferred_element_type=jnp.float32)
    out_ref[0] = row + bf_ref[...]


def linear_model_forward(x, pred_month, latlons, params, *, tm_max=TM_MAX):
    """Flatten + BN-folding + weight-splitting in JAX; hot path in the Pallas kernel."""
    B = x.shape[0]
    x_flat = x.reshape(B, -1).astype(jnp.float32)    # contiguous view; no copy for f32 input
    n_feat = x_flat.shape[1]
    side = jnp.concatenate([pred_month, latlons], axis=-1).astype(jnp.float32)  # (B, 14) tiny
    n_side = side.shape[1]

    # Fold BatchNorm (eval mode, running stats) into the preceding linear layer.
    def fold(i):
        scale = params[f"g{i}"] * jax.lax.rsqrt(params[f"v{i}"] + BN_EPS)     # (1, H)
        w = (params[f"w{i}_t"] * scale).astype(jnp.float32)                    # (in, H)
        c = (params[f"b{i}"] - params[f"m{i}"] * scale).astype(jnp.float32)    # (1, H)
        return w, c

    w0, c0 = fold(0)
    w1, c1 = fold(1)
    h0, h1 = w0.shape[1], w1.shape[1]

    # Split W0' row-wise so the (x | pred_month | latlons) concat is never materialized.
    w0x = w0[:n_feat]                 # (n_feat, h0)
    w0s = w0[n_feat:]                 # (n_side, h0)
    wf = params["wf_t"].reshape(1, h1).astype(jnp.float32)
    bf = params["bf"].reshape(1, 1).astype(jnp.float32)

    # Batch-tile size from a VMEM budget: streams are lane-padded to 128 in VMEM
    # and double-buffered.  Keep >=2 grid steps for big batches so both v7x
    # TensorCores get work through the "parallel" grid axis.
    def pad128(n):
        return _round_up(n, 128)

    per_row_bytes = 2 * 4 * (pad128(n_feat) + pad128(n_side))       # 2 buffers, f32
    tm_cap = max(128, min(tm_max, STREAM_VMEM_BUDGET // per_row_bytes))
    tm_cap -= tm_cap % 128
    if B > 1024:
        tm = min(tm_cap, _round_up(pl.cdiv(B, 2), 128))   # multiple of 128, >=2 grid steps
    else:
        tm = min(B, tm_cap)                               # small batch: full-extent tile
    grid_m = pl.cdiv(B, tm)

    def const_spec(shape):            # VMEM-resident across grid steps
        return pl.BlockSpec(shape, lambda i: (0, 0))

    out = pl.pallas_call(
        mlp_kernel,
        out_shape=jax.ShapeDtypeStruct((grid_m, 1, tm), jnp.float32),
        grid=(grid_m,),
        in_specs=[
            pl.BlockSpec((tm, n_feat), lambda i: (i, 0)),   # streamed per grid step
            pl.BlockSpec((tm, n_side), lambda i: (i, 0)),
            const_spec((n_feat, h0)),
            const_spec((n_side, h0)),
            const_spec((1, h0)),
            const_spec((h0, h1)),
            const_spec((1, h1)),
            const_spec((1, h1)),
            const_spec((1, 1)),
        ],
        out_specs=pl.BlockSpec((1, 1, tm), lambda i: (i, 0, 0)),
        compiler_params=pltpu.CompilerParams(
            dimension_semantics=("parallel",),
            vmem_limit_bytes=VMEM_LIMIT_BYTES),
    )(x_flat, side, w0x, w0s, c0, w1, c1, wf, bf)

    # Flatten (tile-major == row-major) and drop the garbage rows past B.
    return out.reshape(-1)[:B].reshape(B, 1)


def kaiming_uniform(key, fan_in, shape):
    # nn.init.kaiming_uniform_ (a=0, fan_in, leaky_relu): bound = sqrt(6 / fan_in)
    bound = (6.0 / fan_in) ** 0.5
    return jax.random.uniform(key, shape, jnp.float32, -bound, bound)


def init_params(key, input_size, layer_sizes):
    """Deterministic parameter init mirroring LinearModel.__init__ shapes."""
    sizes = [input_size] + list(layer_sizes)
    keys = jax.random.split(key, len(layer_sizes) + 1)
    p = {}
    for i in range(len(layer_sizes)):
        fi, fo = sizes[i], sizes[i + 1]
        w = kaiming_uniform(keys[i], fi, (fo, fi))          # nn.Linear weight (out, in)
        p[f"w{i}_t"] = w.T                                   # pre-transposed (in, out)
        # BatchNorm1d defaults: gamma=1, beta=0, running_mean=0, running_var=1
        p[f"g{i}"] = jnp.ones((1, fo), jnp.float32)
        p[f"b{i}"] = jnp.zeros((1, fo), jnp.float32)
        p[f"m{i}"] = jnp.zeros((1, fo), jnp.float32)
        p[f"v{i}"] = jnp.ones((1, fo), jnp.float32)
    wf = kaiming_uniform(keys[-1], sizes[-1], (1, sizes[-1]))
    p["wf_t"] = wf.T                                         # (H, 1)
    p["bf"] = jnp.zeros((1, 1), jnp.float32)                 # constant_(bias, 0)
    return p


def reference_forward(x, pred_month, latlons, params):
    """Pure-JAX f32 reference of the same eval-mode forward (BN not folded)."""
    B = x.shape[0]
    hp = jax.lax.Precision.HIGHEST
    h = jnp.concatenate([x.reshape(B, -1), pred_month, latlons], axis=-1)
    for i in range(2):
        y = jnp.dot(h, params[f"w{i}_t"], precision=hp)
        y = (y - params[f"m{i}"]) * jax.lax.rsqrt(params[f"v{i}"] + BN_EPS) \
            * params[f"g{i}"] + params[f"b{i}"]
        h = jnp.where(y > 0, y, NEG_SLOPE * y)
    return jnp.dot(h, params["wf_t"], precision=hp) + params["bf"]


if __name__ == "__main__":
    key = jax.random.PRNGKey(0)
    k_x, k_pm, k_ll, k_p = jax.random.split(key, 4)

    # Small shapes consistent with the module: x (batch, seq, features) flattened,
    # include_pred_month=True (+12), include_latlons=True (+2).
    B, SEQ, FEAT = 2, 8, 4
    x = jax.random.normal(k_x, (B, SEQ, FEAT), jnp.float32)
    pred_month = jax.nn.one_hot(
        jax.random.randint(k_pm, (B,), 0, 12), 12, dtype=jnp.float32)
    latlons = jax.random.normal(k_ll, (B, 2), jnp.float32)

    input_size = SEQ * FEAT + 12 + 2          # 32 + 12 + 2 = 46
    layer_sizes = [32, 32]
    params = init_params(k_p, input_size, layer_sizes)

    out = linear_model_forward(x, pred_month, latlons, params)
    jax.block_until_ready(out)

    ref = reference_forward(x, pred_month, latlons, params)
    assert out.shape == (B, 1)
    assert jnp.allclose(out, ref, atol=1e-2, rtol=1e-2), (out, ref)
    print("KERNEL_OK")
</pallas_src>

<mosaic_0001>
module attributes {stable_mosaic.version = 11 : i64} {
  func.func @mlp_kernel(%arg0: i32, %arg1: memref<2x32xf32, #tpu.memory_space<vmem>>, %arg2: memref<2x14xf32, #tpu.memory_space<vmem>>, %arg3: memref<32x32xf32, #tpu.memory_space<vmem>>, %arg4: memref<14x32xf32, #tpu.memory_space<vmem>>, %arg5: memref<1x32xf32, #tpu.memory_space<vmem>>, %arg6: memref<32x32xf32, #tpu.memory_space<vmem>>, %arg7: memref<1x32xf32, #tpu.memory_space<vmem>>, %arg8: memref<1x32xf32, #tpu.memory_space<vmem>>, %arg9: memref<1x1xf32, #tpu.memory_space<vmem>>, %arg10: memref<1x1x2xf32, #tpu.memory_space<vmem>>) attributes {dimension_semantics = [#tpu.dimension_semantics<parallel>], iteration_bounds = array<i64: 1>, scalar_prefetch = 0 : i64, scratch_operands = 0 : i64, tpu.core_type = #tpu.core_type<tc>, window_params = [{transform_indices = @transform_0, window_bounds = array<i64: 2, 32>}, {transform_indices = @transform_1, window_bounds = array<i64: 2, 14>}, {pipeline_mode = #tpu.pipeline_mode<synchronous>, transform_indices = @transform_2, window_bounds = array<i64: 32, 32>}, {pipeline_mode = #tpu.pipeline_mode<synchronous>, transform_indices = @transform_3, window_bounds = array<i64: 14, 32>}, {pipeline_mode = #tpu.pipeline_mode<synchronous>, transform_indices = @transform_4, window_bounds = array<i64: 1, 32>}, {pipeline_mode = #tpu.pipeline_mode<synchronous>, transform_indices = @transform_5, window_bounds = array<i64: 32, 32>}, {pipeline_mode = #tpu.pipeline_mode<synchronous>, transform_indices = @transform_6, window_bounds = array<i64: 1, 32>}, {pipeline_mode = #tpu.pipeline_mode<synchronous>, transform_indices = @transform_7, window_bounds = array<i64: 1, 32>}, {pipeline_mode = #tpu.pipeline_mode<synchronous>, transform_indices = @transform_8, window_bounds = array<i64: 1, 1>}, {transform_indices = @transform_9, window_bounds = array<i64: 1, 1, 2>}]} {
    %c0 = arith.constant 0 : index
    %c0_0 = arith.constant 0 : index
    %0 = vector.load %arg1[%c0, %c0_0] : memref<2x32xf32, #tpu.memory_space<vmem>>, vector<2x32xf32>
    %c0_1 = arith.constant 0 : index
    %c0_2 = arith.constant 0 : index
    %1 = vector.load %arg3[%c0_1, %c0_2] : memref<32x32xf32, #tpu.memory_space<vmem>>, vector<32x32xf32>
    %cst = arith.constant dense<0.000000e+00> : vector<2x32xf32>
    %2 = tpu.matmul %0, %1, %cst {dimension_numbers = #tpu.dot_dimension_numbers<[1], [0], [0], [1], [0, 0, 1, 1], [], []>} : vector<2x32xf32>, vector<32x32xf32>, vector<2x32xf32> -> vector<2x32xf32>
    %c0_3 = arith.constant 0 : index
    %c0_4 = arith.constant 0 : index
    %3 = vector.load %arg2[%c0_3, %c0_4] : memref<2x14xf32, #tpu.memory_space<vmem>>, vector<2x14xf32>
    %c0_5 = arith.constant 0 : index
    %c0_6 = arith.constant 0 : index
    %4 = vector.load %arg4[%c0_5, %c0_6] : memref<14x32xf32, #tpu.memory_space<vmem>>, vector<14x32xf32>
    %cst_7 = arith.constant dense<0.000000e+00> : vector<2x32xf32>
    %5 = tpu.matmul %3, %4, %cst_7 {dimension_numbers = #tpu.dot_dimension_numbers<[1], [0], [0], [1], [0, 0, 1, 1], [], []>} : vector<2x14xf32>, vector<14x32xf32>, vector<2x32xf32> -> vector<2x32xf32>
    %6 = arith.addf %2, %5 : vector<2x32xf32>
    %c0_8 = arith.constant 0 : index
    %c0_9 = arith.constant 0 : index
    %7 = vector.load %arg5[%c0_8, %c0_9] : memref<1x32xf32, #tpu.memory_space<vmem>>, vector<1x32xf32>
    %8 = vector.broadcast %7 : vector<1x32xf32> to vector<2x32xf32>
    %9 = arith.addf %6, %8 : vector<2x32xf32>
    %cst_10 = arith.constant 0.000000e+00 : f32
    %10 = vector.broadcast %cst_10 : f32 to vector<2x32xf32>
    %11 = arith.cmpf ogt, %9, %10 : vector<2x32xf32>
    %cst_11 = arith.constant 1.000000e-01 : f32
    %12 = vector.broadcast %cst_11 : f32 to vector<2x32xf32>
    %13 = arith.mulf %12, %9 : vector<2x32xf32>
    %14 = arith.select %11, %9, %13 : vector<2x32xi1>, vector<2x32xf32>
    %c0_12 = arith.constant 0 : index
    %c0_13 = arith.constant 0 : index
    %15 = vector.load %arg6[%c0_12, %c0_13] : memref<32x32xf32, #tpu.memory_space<vmem>>, vector<32x32xf32>
    %cst_14 = arith.constant dense<0.000000e+00> : vector<2x32xf32>
    %16 = tpu.matmul %14, %15, %cst_14 {dimension_numbers = #tpu.dot_dimension_numbers<[1], [0], [0], [1], [0, 0, 1, 1], [], []>} : vector<2x32xf32>, vector<32x32xf32>, vector<2x32xf32> -> vector<2x32xf32>
    %c0_15 = arith.constant 0 : index
    %c0_16 = arith.constant 0 : index
    %17 = vector.load %arg7[%c0_15, %c0_16] : memref<1x32xf32, #tpu.memory_space<vmem>>, vector<1x32xf32>
    %18 = vector.broadcast %17 : vector<1x32xf32> to vector<2x32xf32>
    %19 = arith.addf %16, %18 : vector<2x32xf32>
    %cst_17 = arith.constant 0.000000e+00 : f32
    %20 = vector.broadcast %cst_17 : f32 to vector<2x32xf32>
    %21 = arith.cmpf ogt, %19, %20 : vector<2x32xf32>
    %cst_18 = arith.constant 1.000000e-01 : f32
    %22 = vector.broadcast %cst_18 : f32 to vector<2x32xf32>
    %23 = arith.mulf %22, %19 : vector<2x32xf32>
    %24 = arith.select %21, %19, %23 : vector<2x32xi1>, vector<2x32xf32>
    %c0_19 = arith.constant 0 : index
    %c0_20 = arith.constant 0 : index
    %25 = vector.load %arg8[%c0_19, %c0_20] : memref<1x32xf32, #tpu.memory_space<vmem>>, vector<1x32xf32>
    %cst_21 = arith.constant dense<0.000000e+00> : vector<1x2xf32>
    %26 = tpu.matmul %25, %24, %cst_21 {dimension_numbers = #tpu.dot_dimension_numbers<[1], [1], [0], [0], [0, 0, 1, 0], [], []>} : vector<1x32xf32>, vector<2x32xf32>, vector<1x2xf32> -> vector<1x2xf32>
    %c0_22 = arith.constant 0 : index
    %c0_23 = arith.constant 0 : index
    %27 = vector.load %arg9[%c0_22, %c0_23] : memref<1x1xf32, #tpu.memory_space<vmem>>, vector<1x1xf32>
    %28 = vector.broadcast %27 : vector<1x1xf32> to vector<1x2xf32>
    %29 = arith.addf %26, %28 : vector<1x2xf32>
    %c0_24 = arith.constant 0 : index
    %c0_25 = arith.constant 0 : index
    %c0_26 = arith.constant 0 : index
    %30 = vector.load %arg10[%c0_24, %c0_25, %c0_26] : memref<1x1x2xf32, #tpu.memory_space<vmem>>, vector<1x1x2xf32>
    %31 = vector.shape_cast %30 : vector<1x1x2xf32> to vector<1x2xf32>
    %32 = vector.shape_cast %29 : vector<1x2xf32> to vector<1x1x2xf32>
    tpu.vector_store %arg10[%c0_24, %c0_25, %c0_26], %32 {strides = array<i32>} : memref<1x1x2xf32, #tpu.memory_space<vmem>>, vector<1x1x2xf32>,
    return
  }
  func.func @transform_0(%arg0: i32) -> (i32, i32) {
    %c0_i32 = arith.constant 0 : i32
    %c0_i32_0 = arith.constant 0 : i32
    return %arg0, %c0_i32 : i32, i32
  }
  func.func @transform_1(%arg0: i32) -> (i32, i32) {
    %c0_i32 = arith.constant 0 : i32
    %c0_i32_0 = arith.constant 0 : i32
    return %arg0, %c0_i32 : i32, i32
  }
  func.func @transform_2(%arg0: i32) -> (i32, i32) {
    %c0_i32 = arith.constant 0 : i32
    %c0_i32_0 = arith.constant 0 : i32
    %c0_i32_1 = arith.constant 0 : i32
    return %c0_i32, %c0_i32_0 : i32, i32
  }
  func.func @transform_3(%arg0: i32) -> (i32, i32) {
    %c0_i32 = arith.constant 0 : i32
    %c0_i32_0 = arith.constant 0 : i32
    %c0_i32_1 = arith.constant 0 : i32
    return %c0_i32, %c0_i32_0 : i32, i32
  }
  func.func @transform_4(%arg0: i32) -> (i32, i32) {
    %c0_i32 = arith.constant 0 : i32
    %c0_i32_0 = arith.constant 0 : i32
    %c0_i32_1 = arith.constant 0 : i32
    return %c0_i32, %c0_i32_0 : i32, i32
  }
  func.func @transform_5(%arg0: i32) -> (i32, i32) {
    %c0_i32 = arith.constant 0 : i32
    %c0_i32_0 = arith.constant 0 : i32
    %c0_i32_1 = arith.constant 0 : i32
    return %c0_i32, %c0_i32_0 : i32, i32
  }
  func.func @transform_6(%arg0: i32) -> (i32, i32) {
    %c0_i32 = arith.constant 0 : i32
    %c0_i32_0 = arith.constant 0 : i32
    %c0_i32_1 = arith.constant 0 : i32
    return %c0_i32, %c0_i32_0 : i32, i32
  }
  func.func @transform_7(%arg0: i32) -> (i32, i32) {
    %c0_i32 = arith.constant 0 : i32
    %c0_i32_0 = arith.constant 0 : i32
    %c0_i32_1 = arith.constant 0 : i32
    return %c0_i32, %c0_i32_0 : i32, i32
  }
  func.func @transform_8(%arg0: i32) -> (i32, i32) {
    %c0_i32 = arith.constant 0 : i32
    %c0_i32_0 = arith.constant 0 : i32
    %c0_i32_1 = arith.constant 0 : i32
    return %c0_i32, %c0_i32_0 : i32, i32
  }
  func.func @transform_9(%arg0: i32) -> (i32, i32, i32) {
    %c0_i32 = arith.constant 0 : i32
    %c0_i32_0 = arith.constant 0 : i32
    %c0_i32_1 = arith.constant 0 : i32
    return %arg0, %c0_i32, %c0_i32_0 : i32, i32, i32
  }
}

</mosaic_0001>

<llo_original>
// kernel: tpu_custom_call.1
$region0: #{tpu_custom_call.1}
  #allocation0 [shape = 'u32[]', space=smem, size = 0x4, offset = 0x4, fixed_abs, tag = 'smem constant byte address 0x4 - core index']
  #allocation1 [shape = 'u32[72,128]{1,0:T(1,128)}', space=vmem, size = 0x9000, scoped, tag = 'internal scratch']
  #allocation2 [shape = 'f32[1,1]{1,0:T(1,128)S(1)}', space=vmem, size = 0x200, scoped, tag = 'scoped memory for tpu_custom_call.1']
  %s0 = inlined_call_operand.vmem [shape: f32[2,32], index: 0, kind: input, shape index: {}]
  %s1 = inlined_call_operand.hbm [shape: f32[2,14], index: 1, kind: input, shape index: {}]
  %s2 = inlined_call_operand.hbm [shape: f32[32,32], index: 2, kind: input, shape index: {}]
  %s3 = inlined_call_operand.hbm [shape: f32[14,32], index: 3, kind: input, shape index: {}]
  %s4 = inlined_call_operand.vmem [shape: f32[1,32], index: 4, kind: input, shape index: {}]
  %s5 = inlined_call_operand.hbm [shape: f32[32,32], index: 5, kind: input, shape index: {}]
  %s6 = inlined_call_operand.vmem [shape: f32[1,32], index: 6, kind: input, shape index: {}]
  %s7 = inlined_call_operand.vmem [shape: f32[1,32], index: 7, kind: input, shape index: {}]
  %s8 = inlined_call_operand.<no memory space> [shape: f32[1,1], index: 8, kind: input, shape index: {}]
  %s9 = inlined_call_operand.hbm [shape: f32[1,1,2], index: 9, kind: output, shape index: {}]
  %s10 = sld [smem:[#allocation0]]
  $region62: #{tpu_custom_call.1} parent=0
    _
  %s12 = ssub.s32 1, %s10
  %s13 = scalar_select 0, %s12, %s10
  %v14 = vstv %s8
  %15 = vst [vmem:[#allocation2] sm:$0x1] %v14
  $region1: #{tpu_custom_call.1} parent=0
    #allocation3 [shape = 'u8[1024]{0}', space=vmem, size = 0x400, scoped, tag = 'input window, operand 1, single buffered']
    #allocation4 [shape = 's32[1]{0}', space=sflag, size = 0x4, scoped, tag = 'scoped memory for tpu_custom_call.1']
    #allocation5 [shape = 's32[1]{0}', space=sflag, size = 0x4, scoped, tag = 'scoped memory for tpu_custom_call.1']
    #allocation6 [shape = 'u8[16384]{0}', space=vmem, size = 0x4000, scoped, tag = 'input window, operand 2, single buffered']
    #allocation7 [shape = 's32[1]{0}', space=sflag, size = 0x4, scoped, tag = 'scoped memory for tpu_custom_call.1']
    #allocation8 [shape = 'u8[8192]{0}', space=vmem, size = 0x2000, scoped, tag = 'input window, operand 3, single buffered']
    #allocation9 [shape = 'u8[16384]{0}', space=vmem, size = 0x4000, scoped, tag = 'input window, operand 5, single buffered']
    #allocation10 [shape = 's32[1]{0}', space=sflag, size = 0x4, scoped, tag = 'scoped memory for tpu_custom_call.1']
    #allocation11 [shape = 'u8[512]{0}', space=vmem, size = 0x400, scoped, tag = 'output window, operand 0, single buffered']
    %16 = vsyncpa [#allocation4], 0
    %17 = vsyncpa [#allocation7], 0
    %18 = vsyncpa [#allocation10], 0
    %19 = vsyncpa [#allocation5], 0
    // Predicated region
    $region2: #{tpu_custom_call.1} parent=1 // pred_check
      _
    $region3: #{tpu_custom_call.1} parent=1 // pred_check_branch
      %21 = sbr.rel (0) target = $region5
    $region4: #{tpu_custom_call.1} parent=1 // pred_region
      _
    $region5: #{tpu_custom_call.1} parent=1 // pred_fallthru
      _
    // Predicated region
    $region6: #{tpu_custom_call.1} parent=1 // pred_check
      _
    $region7: #{tpu_custom_call.1} parent=1 // pred_check_branch
      %23 = sbr.rel (0) target = $region9
    $region8: #{tpu_custom_call.1} parent=1 // pred_region
      %25 = vsyncadd [#allocation4], 0
      %s27 = sshll.u32 %s1, 4
      %s28 = int_to_ptr.hbm [resolvable:$true] %s27
      %s29 = sshll.u32 [#allocation3], 4
      %s30 = int_to_ptr.vmem [resolvable:$true] %s29
      %32 = dma.hbm_to_vmem [thread:$0]  %s28, 32, %s30, [#allocation4]
    $region9: #{tpu_custom_call.1} parent=1 // pred_fallthru
      _
    // Predicated region
    $region10: #{tpu_custom_call.1} parent=1 // pred_check
      _
    $region11: #{tpu_custom_call.1} parent=1 // pred_check_branch
      %34 = sbr.rel (0) target = $region13
    $region12: #{tpu_custom_call.1} parent=1 // pred_region
      %36 = vsyncadd [#allocation7], 0
      %s37 = sshll.u32 %s2, 4
      %s38 = int_to_ptr.hbm [resolvable:$true] %s37
      %s39 = sshll.u32 [#allocation6], 4
      %s40 = int_to_ptr.vmem [resolvable:$true] %s39
      %45 = dma.hbm_to_vmem [thread:$0]  %s38, 512, %s40, [#allocation7], 128, 128, 8
    $region13: #{tpu_custom_call.1} parent=1 // pred_fallthru
      _
    // Predicated region
    $region14: #{tpu_custom_call.1} parent=1 // pred_check
      _
    $region15: #{tpu_custom_call.1} parent=1 // pred_check_branch
      %47 = sbr.rel (0) target = $region17
    $region16: #{tpu_custom_call.1} parent=1 // pred_region
      %49 = vsyncadd [#allocation7], 0
      %s50 = sshll.u32 %s3, 4
      %s51 = int_to_ptr.hbm [resolvable:$true] %s50
      %s52 = sshll.u32 [#allocation8], 4
      %s53 = int_to_ptr.vmem [resolvable:$true] %s52
      %58 = dma.hbm_to_vmem [thread:$0]  %s51, 256, %s53, [#allocation7], 128, 128, 8
    $region17: #{tpu_custom_call.1} parent=1 // pred_fallthru
      _
    // Predicated region
    $region18: #{tpu_custom_call.1} parent=1 // pred_check
      _
    $region19: #{tpu_custom_call.1} parent=1 // pred_check_branch
      %60 = sbr.rel (0) target = $region21
    $region20: #{tpu_custom_call.1} parent=1 // pred_region
      _
    $region21: #{tpu_custom_call.1} parent=1 // pred_fallthru
      _
    // Predicated region
    $region22: #{tpu_custom_call.1} parent=1 // pred_check
      _
    $region23: #{tpu_custom_call.1} parent=1 // pred_check_branch
      %62 = sbr.rel (0) target = $region25
    $region24: #{tpu_custom_call.1} parent=1 // pred_region
      %64 = vsyncadd [#allocation10], 0
      %s65 = sshll.u32 %s5, 4
      %s66 = int_to_ptr.hbm [resolvable:$true] %s65
      %s67 = sshll.u32 [#allocation9], 4
      %s68 = int_to_ptr.vmem [resolvable:$true] %s67
      %73 = dma.hbm_to_vmem [thread:$0]  %s66, 512, %s68, [#allocation10], 128, 128, 8
    $region25: #{tpu_custom_call.1} parent=1 // pred_fallthru
      _
    // Predicated region
    $region26: #{tpu_custom_call.1} parent=1 // pred_check
      _
    $region27: #{tpu_custom_call.1} parent=1 // pred_check_branch
      %75 = sbr.rel (0) target = $region29
    $region28: #{tpu_custom_call.1} parent=1 // pred_region
      _
    $region29: #{tpu_custom_call.1} parent=1 // pred_fallthru
      _
    // Predicated region
    $region30: #{tpu_custom_call.1} parent=1 // pred_check
      _
    $region31: #{tpu_custom_call.1} parent=1 // pred_check_branch
      %77 = sbr.rel (0) target = $region33
    $region32: #{tpu_custom_call.1} parent=1 // pred_region
      _
    $region33: #{tpu_custom_call.1} parent=1 // pred_fallthru
      _
    // Predicated region
    $region34: #{tpu_custom_call.1} parent=1 // pred_check
      _
    $region35: #{tpu_custom_call.1} parent=1 // pred_check_branch
      %79 = sbr.rel (0) target = $region37
    $region36: #{tpu_custom_call.1} parent=1 // pred_region
      _
    $region37: #{tpu_custom_call.1} parent=1 // pred_fallthru
      _
    // Predicated region
    $region38: #{tpu_custom_call.1} parent=1 // pred_check
      _
    $region39: #{tpu_custom_call.1} parent=1 // pred_check_branch
      %81 = sbr.rel (0) target = $region41
    $region40: #{tpu_custom_call.1} parent=1 // pred_region
      %83 = dma.done [#allocation4], 32
    $region41: #{tpu_custom_call.1} parent=1 // pred_fallthru
      _
    // Predicated region
    $region42: #{tpu_custom_call.1} parent=1 // pred_check
      _
    $region43: #{tpu_custom_call.1} parent=1 // pred_check_branch
      %85 = sbr.rel (0) target = $region45
    $region44: #{tpu_custom_call.1} parent=1 // pred_region
      %87 = dma.done [#allocation7], 512
    $region45: #{tpu_custom_call.1} parent=1 // pred_fallthru
      _
    // Predicated region
    $region46: #{tpu_custom_call.1} parent=1 // pred_check
      _
    $region47: #{tpu_custom_call.1} parent=1 // pred_check_branch
      %89 = sbr.rel (0) target = $region49
    $region48: #{tpu_custom_call.1} parent=1 // pred_region
      %91 = dma.done [#allocation7], 256
    $region49: #{tpu_custom_call.1} parent=1 // pred_fallthru
      _
    // Predicated region
    $region50: #{tpu_custom_call.1} parent=1 // pred_check
      _
    $region51: #{tpu_custom_call.1} parent=1 // pred_check_branch
      %93 = sbr.rel (0) target = $region53
    $region52: #{tpu_custom_call.1} parent=1 // pred_region
      %95 = dma.done [#allocation10], 512
    $region53: #{tpu_custom_call.1} parent=1 // pred_fallthru
      _
    %v96 = vld [vmem:[%s0] sm:$0x3]
    %v97 = vld [vmem:[#allocation6] sm:$0xff]
    %v98 = vld [vmem:[#allocation6 + $0x8] sm:$0xff]
    %v99 = vld [vmem:[#allocation6 + $0x10] sm:$0xff]
    %v100 = vld [vmem:[#allocation6 + $0x18] sm:$0xff]
    %v101 = vld [vmem:[#allocation3] sm:$0x3]
    %v102 = vld [vmem:[#allocation8] sm:$0xff]
    %v103 = vld [vmem:[#allocation8 + $0x8] sm:$0x3f]
    %vm104 = vcmask 113664
    %v106 = vsel %vm104, %v101, 0
    %vm108 = vcmask 1045504
    %v110 = vsel %vm108, %v103, 0
    %112 = vmatpush.msra.mxu0 0.0
    %113 = vmatpush.msra.mxu0 0.0
    %114 = vmatpush.msra.mxu0 0.0
    %115 = vmatpush.msra.mxu0 0.0
    %116 = vmatpush.msra.mxu0 0.0
    %117 = vmatpush.msra.mxu0 0.0
    %118 = vmatpush.msra.mxu0 0.0
    %119 = vmatpush.msra.mxu0 0.0
    %120 = vmatpush.msra.mxu0 0.0
    %121 = vmatpush.msra.mxu0 0.0
    %122 = vmatpush.msra.mxu0 0.0
    %123 = vmatpush.msra.mxu0 0.0
    %124 = vmatpush.msra.mxu0 0.0
    %125 = vmatpush.msra.mxu0 0.0
    %126 = vmatpush.msra.mxu0 %v110
    %127 = vmatpush.msra.mxu0 %v102
    %128 = vmatmul.f32.gmra.mxu0 %v106
    %v129 = vpop.f32.mrf.mxu0
    %v130 = vadd.f32 0.0, %v129
    %131 = vdwg.mxu0
    %vm132 = vcmask 261120
    %v134 = vsel %vm132, %v96, 0
    %136 = vmatpush.msra.mxu0 0.0
    %137 = vmatpush.msra.mxu0 0.0
    %138 = vmatpush.msra.mxu0 0.0
    %139 = vmatpush.msra.mxu0 0.0
    %140 = vmatpush.msra.mxu0 0.0
    %141 = vmatpush.msra.mxu0 0.0
    %142 = vmatpush.msra.mxu0 0.0
    %143 = vmatpush.msra.mxu0 0.0
    %144 = vmatpush.msra.mxu0 0.0
    %145 = vmatpush.msra.mxu0 0.0
    %146 = vmatpush.msra.mxu0 0.0
    %147 = vmatpush.msra.mxu0 0.0
    %148 = vmatpush.msra.mxu0 %v100
    %149 = vmatpush.msra.mxu0 %v99
    %150 = vmatpush.msra.mxu0 %v98
    %151 = vmatpush.msra.mxu0 %v97
    %152 = vmatmul.f32.gmra.mxu0 %v134
    %v153 = vpop.f32.mrf.mxu0
    %v154 = vadd.f32 %v130, %v153
    %155 = vdwg.mxu0
    %v156 = vld [vmem:[%s4] sm:$0x1]
    %v158 = vperm.slane %v156, 0
    %v160 = vadd.f32 %v154, %v158
    %vm161 = vcmp.gt.f32.partialorder %v160, 0.0
    %v162 = vmul.f32 %v160, 0.1
    %v163 = vsel %vm161, %v160, %v162
    %v164 = vld [vmem:[#allocation9] sm:$0xff]
    %v165 = vld [vmem:[#allocation9 + $0x8] sm:$0xff]
    %v166 = vld [vmem:[#allocation9 + $0x10] sm:$0xff]
    %v167 = vld [vmem:[#allocation9 + $0x18] sm:$0xff]
    %v168 = vld [vmem:[%s6] sm:$0x1]
    %v170 = vperm.slane %v168, 0
    %v173 = vsel %vm132, %v163, 0
    %175 = vmatpush.msra.mxu0 0.0
    %176 = vmatpush.msra.mxu0 0.0
    %177 = vmatpush.msra.mxu0 0.0
    %178 = vmatpush.msra.mxu0 0.0
    %179 = vmatpush.msra.mxu0 0.0
    %180 = vmatpush.msra.mxu0 0.0
    %181 = vmatpush.msra.mxu0 0.0
    %182 = vmatpush.msra.mxu0 0.0
    %183 = vmatpush.msra.mxu0 0.0
    %184 = vmatpush.msra.mxu0 0.0
    %185 = vmatpush.msra.mxu0 0.0
    %186 = vmatpush.msra.mxu0 0.0
    %187 = vmatpush.msra.mxu0 %v167
    %188 = vmatpush.msra.mxu0 %v166
    %189 = vmatpush.msra.mxu0 %v165
    %190 = vmatpush.msra.mxu0 %v164
    %191 = vmatmul.f32.gmra.mxu0 %v173
    %v192 = vpop.f32.mrf.mxu0
    %v193 = vadd.f32 %v170, %v192
    %194 = vdwg.mxu0
    %vm195 = vcmp.gt.f32.partialorder %v193, 0.0
    %v196 = vmul.f32 %v193, 0.1
    %v197 = vsel %vm195, %v193, %v196
    %v198 = vld [vmem:[%s7] sm:$0x1]
    %v199 = vld [vmem:[#allocation2] sm:$0x1]
    %201 = vset.pattern.permute.xlu0 0
    %202 = vperm.xlu0 %201, %v199
    %v203 = vpop.permute.xlu0 %202
    %v205 = vperm.slane %v203, 0
    %v207 = vsel %vm132, %v198, 0
    %v210 = vsel %vm132, %v197, 0
    %212 = vmatpush.xpose.msra.mxu0 0.0
    %213 = vmatpush.xpose.msra.mxu0 0.0
    %214 = vmatpush.xpose.msra.mxu0 0.0
    %215 = vmatpush.xpose.msra.mxu0 0.0
    %216 = vmatpush.xpose.msra.mxu0 0.0
    %217 = vmatpush.xpose.msra.mxu0 0.0
    %218 = vmatpush.xpose.msra.mxu0 0.0
    %219 = vmatpush.xpose.msra.mxu0 0.0
    %220 = vmatpush.xpose.msra.mxu0 0.0
    %221 = vmatpush.xpose.msra.mxu0 0.0
    %222 = vmatpush.xpose.msra.mxu0 0.0
    %223 = vmatpush.xpose.msra.mxu0 0.0
    %224 = vmatpush.xpose.msra.mxu0 0.0
    %225 = vmatpush.xpose.msra.mxu0 0.0
    %226 = vmatpush.xpose.msra.mxu0 0.0
    %227 = vmatpush.xpose.msra.mxu0 %v210
    %228 = vmatmul.f32.gmra.mxu0 %v207
    %v229 = vpop.f32.mrf.mxu0
    %v230 = vadd.f32 %v205, %v229
    %231 = vdwg.mxu0
    %vm232 = vcmask 8192
    %233 = vst.msk [vmem:[#allocation11] sm:$0x1] %vm232, %v230
    // Predicated region
    $region54: #{tpu_custom_call.1} parent=1 // pred_check
      _
    $region55: #{tpu_custom_call.1} parent=1 // pred_check_branch
      %235 = sbr.rel (0) target = $region57
    $region56: #{tpu_custom_call.1} parent=1 // pred_region
      %237 = vsyncadd [#allocation5], 0
      %s239 = sshll.u32 [#allocation11], 4
      %s240 = int_to_ptr.vmem [resolvable:$true] %s239
      %s241 = sshll.u32 %s9, 4
      %s242 = int_to_ptr.hbm [resolvable:$true] %s241
      %244 = dma.vmem_to_hbm [thread:$0]  %s240, 16, %s242, [#allocation5]
    $region57: #{tpu_custom_call.1} parent=1 // pred_fallthru
      _
    // Predicated region
    $region58: #{tpu_custom_call.1} parent=1 // pred_check
      _
    $region59: #{tpu_custom_call.1} parent=1 // pred_check_branch
      %246 = sbr.rel (0) target = $region61
    $region60: #{tpu_custom_call.1} parent=1 // pred_region
      %248 = dma.done [#allocation5], 16
    $region61: #{tpu_custom_call.1} parent=1 // pred_fallthru
      _
    %249 = vsyncpa [#allocation4], 1
    %250 = vsyncpa [#allocation7], 1
    %251 = vsyncpa [#allocation10], 1
    %252 = vsyncpa [#allocation5], 1

</llo_original>
